<compile_context>
chip_gen: v6e
topology: v6e:2x2x1
jax: 0.10.0
libtpu: 0.0.40
codegen_flags: <defaults>
</compile_context>

<pallas_src>
import jax
import jax.numpy as jnp
from jax.experimental import pallas as pl
from jax.experimental.pallas import tpu as pltpu


def _conv1x1_pad_double_relu_kernel(x_ref, w_ref, b_ref, o_ref):
    # x_ref : (N, Cin, H,  W )   VMEM  input (NCHW)
    # w_ref : (Cout*Cin,)        SMEM  conv weight (row-major [co*Cin+ci]), pre-scaled by 2
    # b_ref : (Cout,)            SMEM  conv bias,   pre-scaled by 2
    # o_ref : (N, Cout, Hp, Wp)  VMEM  output (padded NCHW)
    N, Cin, H, W = x_ref.shape
    _, Cout, Hp, Wp = o_ref.shape
    ph = (Hp - H) // 2
    pw = (Wp - W) // 2

    # Load each input channel plane once (f32 accumulate); tiny and register-resident.
    xs = [x_ref[:, ci:ci + 1, :, :].astype(jnp.float32) for ci in range(Cin)]

    # Per output channel: set the whole plane to the border value relu(2*b)
    # (matches Conv2d zero-padding + doubling + ReLU), then overwrite the
    # interior with relu(2*(W@x + b)).  Loops are tiny and fully unrolled.
    for co in range(Cout):
        border = jnp.maximum(b_ref[co], 0.0)
        o_ref[:, co:co + 1, :, :] = jnp.full((N, 1, Hp, Wp), border,
                                             dtype=o_ref.dtype)

        acc = w_ref[co * Cin] * xs[0]
        for ci in range(1, Cin):
            acc = acc + w_ref[co * Cin + ci] * xs[ci]
        o_ref[:, co:co + 1, ph:ph + H, pw:pw + W] = jnp.maximum(
            acc + b_ref[co], 0.0).astype(o_ref.dtype)


def conv1x1_pad1_double_relu(x_nchw, w_oihw, b, *, padding=1):
    """Equivalent of relu(2 * Conv2d(Cin->Cout, k=1, stride=1, padding=1)(x))."""
    N, Cin, H, W = x_nchw.shape
    Cout = w_oihw.shape[0]
    Hp, Wp = H + 2 * padding, W + 2 * padding

    # Fold the `v1 + v1` doubling into the (tiny, constant-foldable) params.
    # Weight flattened to 1-D so its SMEM footprint is ~128 B, not an 8x128 tile.
    w2 = (2.0 * w_oihw[:, :, 0, 0]).reshape(-1).astype(jnp.float32)   # (Cout*Cin,)
    b2 = (2.0 * b).astype(jnp.float32)                                # (Cout,)

    return pl.pallas_call(
        _conv1x1_pad_double_relu_kernel,
        out_shape=jax.ShapeDtypeStruct((N, Cout, Hp, Wp), x_nchw.dtype),
        in_specs=[
            pl.BlockSpec(memory_space=pltpu.MemorySpace.VMEM),   # x (whole array)
            pl.BlockSpec(memory_space=pltpu.MemorySpace.SMEM),   # 2*w scalars (flat)
            pl.BlockSpec(memory_space=pltpu.MemorySpace.SMEM),   # 2*b scalars
        ],
        out_specs=pl.BlockSpec(memory_space=pltpu.MemorySpace.VMEM),
    )(x_nchw, w2, b2)


def reference(x_nchw, w_oihw, b, *, padding=1):
    """Pure-JAX reference for correctness checking."""
    y = jax.lax.conv_general_dilated(
        x_nchw, w_oihw,
        window_strides=(1, 1),
        padding=[(padding, padding), (padding, padding)],
        dimension_numbers=("NCHW", "OIHW", "NCHW"),
    ) + b.reshape(1, -1, 1, 1)
    return jnp.maximum(y + y, 0.0)


if __name__ == "__main__":
    key = jax.random.PRNGKey(0)
    k_x, k_w, k_b = jax.random.split(key, 3)

    # Shapes implied by the module: x1 = torch.randn(1, 3, 64, 64).
    N, Cin, Cout, H, W = 1, 3, 8, 64, 64
    x = jax.random.normal(k_x, (N, Cin, H, W), dtype=jnp.float32)

    # Deterministic conv1 parameters (Conv2d(3, 8, 1) -> weight (8,3,1,1), bias (8,))
    fan_in = Cin * 1 * 1
    bound = 1.0 / (fan_in ** 0.5)
    w = jax.random.uniform(k_w, (Cout, Cin, 1, 1), jnp.float32, -bound, bound)
    b = jax.random.uniform(k_b, (Cout,), jnp.float32, -bound, bound)

    out = conv1x1_pad1_double_relu(x, w, b)
    out = jax.block_until_ready(out)

    ref = reference(x, w, b)
    assert out.shape == (N, Cout, H + 2, W + 2), out.shape
    assert jnp.allclose(out, ref, atol=1e-5, rtol=1e-5), "mismatch vs reference"

    print("KERNEL_OK")
</pallas_src>

<mosaic_0001>
module attributes {stable_mosaic.version = 11 : i64} {
  func.func @_conv1x1_pad_double_relu_kernel(%arg0: memref<1x3x64x64xf32, #tpu.memory_space<vmem>>, %arg1: memref<24xf32, #tpu.memory_space<smem>>, %arg2: memref<8xf32, #tpu.memory_space<smem>>, %arg3: memref<1x8x66x66xf32, #tpu.memory_space<vmem>>) attributes {dimension_semantics = [], scalar_prefetch = 0 : i64, scratch_operands = 0 : i64, tpu.core_type = #tpu.core_type<tc>} {
    %c0 = arith.constant 0 : index
    %c0_0 = arith.constant 0 : index
    %c0_1 = arith.constant 0 : index
    %c0_2 = arith.constant 0 : index
    %0 = vector.load %arg0[%c0, %c0_0, %c0_1, %c0_2] : memref<1x3x64x64xf32, #tpu.memory_space<vmem>>, vector<1x1x64x64xf32>
    %c0_3 = arith.constant 0 : index
    %c1 = arith.constant 1 : index
    %c0_4 = arith.constant 0 : index
    %c0_5 = arith.constant 0 : index
    %1 = vector.load %arg0[%c0_3, %c1, %c0_4, %c0_5] : memref<1x3x64x64xf32, #tpu.memory_space<vmem>>, vector<1x1x64x64xf32>
    %c0_6 = arith.constant 0 : index
    %c2 = arith.constant 2 : index
    %c0_7 = arith.constant 0 : index
    %c0_8 = arith.constant 0 : index
    %2 = vector.load %arg0[%c0_6, %c2, %c0_7, %c0_8] : memref<1x3x64x64xf32, #tpu.memory_space<vmem>>, vector<1x1x64x64xf32>
    %c0_9 = arith.constant 0 : index
    %3 = memref.load %arg2[%c0_9] : memref<8xf32, #tpu.memory_space<smem>>
    %cst = arith.constant 0.000000e+00 : f32
    %4 = arith.maximumf %3, %cst : f32
    %5 = vector.broadcast %4 : f32 to vector<1x1x66x66xf32>
    %c0_10 = arith.constant 0 : index
    %c0_11 = arith.constant 0 : index
    %c0_12 = arith.constant 0 : index
    %c0_13 = arith.constant 0 : index
    %6 = vector.load %arg3[%c0_10, %c0_11, %c0_12, %c0_13] : memref<1x8x66x66xf32, #tpu.memory_space<vmem>>, vector<1x1x66x66xf32>
    tpu.vector_store %arg3[%c0_10, %c0_11, %c0_12, %c0_13], %5 {strides = array<i32>} : memref<1x8x66x66xf32, #tpu.memory_space<vmem>>, vector<1x1x66x66xf32>,
    %c0_14 = arith.constant 0 : index
    %7 = memref.load %arg1[%c0_14] : memref<24xf32, #tpu.memory_space<smem>>
    %8 = vector.broadcast %7 : f32 to vector<1x1x64x64xf32>
    %9 = arith.mulf %8, %0 : vector<1x1x64x64xf32>
    %c1_15 = arith.constant 1 : index
    %10 = memref.load %arg1[%c1_15] : memref<24xf32, #tpu.memory_space<smem>>
    %11 = vector.broadcast %10 : f32 to vector<1x1x64x64xf32>
    %12 = arith.mulf %11, %1 : vector<1x1x64x64xf32>
    %13 = arith.addf %9, %12 : vector<1x1x64x64xf32>
    %c2_16 = arith.constant 2 : index
    %14 = memref.load %arg1[%c2_16] : memref<24xf32, #tpu.memory_space<smem>>
    %15 = vector.broadcast %14 : f32 to vector<1x1x64x64xf32>
    %16 = arith.mulf %15, %2 : vector<1x1x64x64xf32>
    %17 = arith.addf %13, %16 : vector<1x1x64x64xf32>
    %c0_17 = arith.constant 0 : index
    %18 = memref.load %arg2[%c0_17] : memref<8xf32, #tpu.memory_space<smem>>
    %19 = vector.broadcast %18 : f32 to vector<1x1x64x64xf32>
    %20 = arith.addf %17, %19 : vector<1x1x64x64xf32>
    %cst_18 = arith.constant 0.000000e+00 : f32
    %21 = vector.broadcast %cst_18 : f32 to vector<1x1x64x64xf32>
    %22 = arith.maximumf %20, %21 : vector<1x1x64x64xf32>
    %c0_19 = arith.constant 0 : index
    %c0_20 = arith.constant 0 : index
    %c1_21 = arith.constant 1 : index
    %c1_22 = arith.constant 1 : index
    %23 = vector.load %arg3[%c0_19, %c0_20, %c1_21, %c1_22] : memref<1x8x66x66xf32, #tpu.memory_space<vmem>>, vector<1x1x64x64xf32>
    tpu.vector_store %arg3[%c0_19, %c0_20, %c1_21, %c1_22], %22 {strides = array<i32>} : memref<1x8x66x66xf32, #tpu.memory_space<vmem>>, vector<1x1x64x64xf32>,
    %c1_23 = arith.constant 1 : index
    %24 = memref.load %arg2[%c1_23] : memref<8xf32, #tpu.memory_space<smem>>
    %cst_24 = arith.constant 0.000000e+00 : f32
    %25 = arith.maximumf %24, %cst_24 : f32
    %26 = vector.broadcast %25 : f32 to vector<1x1x66x66xf32>
    %c0_25 = arith.constant 0 : index
    %c1_26 = arith.constant 1 : index
    %c0_27 = arith.constant 0 : index
    %c0_28 = arith.constant 0 : index
    %27 = vector.load %arg3[%c0_25, %c1_26, %c0_27, %c0_28] : memref<1x8x66x66xf32, #tpu.memory_space<vmem>>, vector<1x1x66x66xf32>
    tpu.vector_store %arg3[%c0_25, %c1_26, %c0_27, %c0_28], %26 {strides = array<i32>} : memref<1x8x66x66xf32, #tpu.memory_space<vmem>>, vector<1x1x66x66xf32>,
    %c3 = arith.constant 3 : index
    %28 = memref.load %arg1[%c3] : memref<24xf32, #tpu.memory_space<smem>>
    %29 = vector.broadcast %28 : f32 to vector<1x1x64x64xf32>
    %30 = arith.mulf %29, %0 : vector<1x1x64x64xf32>
    %c4 = arith.constant 4 : index
    %31 = memref.load %arg1[%c4] : memref<24xf32, #tpu.memory_space<smem>>
    %32 = vector.broadcast %31 : f32 to vector<1x1x64x64xf32>
    %33 = arith.mulf %32, %1 : vector<1x1x64x64xf32>
    %34 = arith.addf %30, %33 : vector<1x1x64x64xf32>
    %c5 = arith.constant 5 : index
    %35 = memref.load %arg1[%c5] : memref<24xf32, #tpu.memory_space<smem>>
    %36 = vector.broadcast %35 : f32 to vector<1x1x64x64xf32>
    %37 = arith.mulf %36, %2 : vector<1x1x64x64xf32>
    %38 = arith.addf %34, %37 : vector<1x1x64x64xf32>
    %c1_29 = arith.constant 1 : index
    %39 = memref.load %arg2[%c1_29] : memref<8xf32, #tpu.memory_space<smem>>
    %40 = vector.broadcast %39 : f32 to vector<1x1x64x64xf32>
    %41 = arith.addf %38, %40 : vector<1x1x64x64xf32>
    %cst_30 = arith.constant 0.000000e+00 : f32
    %42 = vector.broadcast %cst_30 : f32 to vector<1x1x64x64xf32>
    %43 = arith.maximumf %41, %42 : vector<1x1x64x64xf32>
    %c0_31 = arith.constant 0 : index
    %c1_32 = arith.constant 1 : index
    %c1_33 = arith.constant 1 : index
    %c1_34 = arith.constant 1 : index
    %44 = vector.load %arg3[%c0_31, %c1_32, %c1_33, %c1_34] : memref<1x8x66x66xf32, #tpu.memory_space<vmem>>, vector<1x1x64x64xf32>
    tpu.vector_store %arg3[%c0_31, %c1_32, %c1_33, %c1_34], %43 {strides = array<i32>} : memref<1x8x66x66xf32, #tpu.memory_space<vmem>>, vector<1x1x64x64xf32>,
    %c2_35 = arith.constant 2 : index
    %45 = memref.load %arg2[%c2_35] : memref<8xf32, #tpu.memory_space<smem>>
    %cst_36 = arith.constant 0.000000e+00 : f32
    %46 = arith.maximumf %45, %cst_36 : f32
    %47 = vector.broadcast %46 : f32 to vector<1x1x66x66xf32>
    %c0_37 = arith.constant 0 : index
    %c2_38 = arith.constant 2 : index
    %c0_39 = arith.constant 0 : index
    %c0_40 = arith.constant 0 : index
    %48 = vector.load %arg3[%c0_37, %c2_38, %c0_39, %c0_40] : memref<1x8x66x66xf32, #tpu.memory_space<vmem>>, vector<1x1x66x66xf32>
    tpu.vector_store %arg3[%c0_37, %c2_38, %c0_39, %c0_40], %47 {strides = array<i32>} : memref<1x8x66x66xf32, #tpu.memory_space<vmem>>, vector<1x1x66x66xf32>,
    %c6 = arith.constant 6 : index
    %49 = memref.load %arg1[%c6] : memref<24xf32, #tpu.memory_space<smem>>
    %50 = vector.broadcast %49 : f32 to vector<1x1x64x64xf32>
    %51 = arith.mulf %50, %0 : vector<1x1x64x64xf32>
    %c7 = arith.constant 7 : index
    %52 = memref.load %arg1[%c7] : memref<24xf32, #tpu.memory_space<smem>>
    %53 = vector.broadcast %52 : f32 to vector<1x1x64x64xf32>
    %54 = arith.mulf %53, %1 : vector<1x1x64x64xf32>
    %55 = arith.addf %51, %54 : vector<1x1x64x64xf32>
    %c8 = arith.constant 8 : index
    %56 = memref.load %arg1[%c8] : memref<24xf32, #tpu.memory_space<smem>>
    %57 = vector.broadcast %56 : f32 to vector<1x1x64x64xf32>
    %58 = arith.mulf %57, %2 : vector<1x1x64x64xf32>
    %59 = arith.addf %55, %58 : vector<1x1x64x64xf32>
    %c2_41 = arith.constant 2 : index
    %60 = memref.load %arg2[%c2_41] : memref<8xf32, #tpu.memory_space<smem>>
    %61 = vector.broadcast %60 : f32 to vector<1x1x64x64xf32>
    %62 = arith.addf %59, %61 : vector<1x1x64x64xf32>
    %cst_42 = arith.constant 0.000000e+00 : f32
    %63 = vector.broadcast %cst_42 : f32 to vector<1x1x64x64xf32>
    %64 = arith.maximumf %62, %63 : vector<1x1x64x64xf32>
    %c0_43 = arith.constant 0 : index
    %c2_44 = arith.constant 2 : index
    %c1_45 = arith.constant 1 : index
    %c1_46 = arith.constant 1 : index
    %65 = vector.load %arg3[%c0_43, %c2_44, %c1_45, %c1_46] : memref<1x8x66x66xf32, #tpu.memory_space<vmem>>, vector<1x1x64x64xf32>
    tpu.vector_store %arg3[%c0_43, %c2_44, %c1_45, %c1_46], %64 {strides = array<i32>} : memref<1x8x66x66xf32, #tpu.memory_space<vmem>>, vector<1x1x64x64xf32>,
    %c3_47 = arith.constant 3 : index
    %66 = memref.load %arg2[%c3_47] : memref<8xf32, #tpu.memory_space<smem>>
    %cst_48 = arith.constant 0.000000e+00 : f32
    %67 = arith.maximumf %66, %cst_48 : f32
    %68 = vector.broadcast %67 : f32 to vector<1x1x66x66xf32>
    %c0_49 = arith.constant 0 : index
    %c3_50 = arith.constant 3 : index
    %c0_51 = arith.constant 0 : index
    %c0_52 = arith.constant 0 : index
    %69 = vector.load %arg3[%c0_49, %c3_50, %c0_51, %c0_52] : memref<1x8x66x66xf32, #tpu.memory_space<vmem>>, vector<1x1x66x66xf32>
    tpu.vector_store %arg3[%c0_49, %c3_50, %c0_51, %c0_52], %68 {strides = array<i32>} : memref<1x8x66x66xf32, #tpu.memory_space<vmem>>, vector<1x1x66x66xf32>,
    %c9 = arith.constant 9 : index
    %70 = memref.load %arg1[%c9] : memref<24xf32, #tpu.memory_space<smem>>
    %71 = vector.broadcast %70 : f32 to vector<1x1x64x64xf32>
    %72 = arith.mulf %71, %0 : vector<1x1x64x64xf32>
    %c10 = arith.constant 10 : index
    %73 = memref.load %arg1[%c10] : memref<24xf32, #tpu.memory_space<smem>>
    %74 = vector.broadcast %73 : f32 to vector<1x1x64x64xf32>
    %75 = arith.mulf %74, %1 : vector<1x1x64x64xf32>
    %76 = arith.addf %72, %75 : vector<1x1x64x64xf32>
    %c11 = arith.constant 11 : index
    %77 = memref.load %arg1[%c11] : memref<24xf32, #tpu.memory_space<smem>>
    %78 = vector.broadcast %77 : f32 to vector<1x1x64x64xf32>
    %79 = arith.mulf %78, %2 : vector<1x1x64x64xf32>
    %80 = arith.addf %76, %79 : vector<1x1x64x64xf32>
    %c3_53 = arith.constant 3 : index
    %81 = memref.load %arg2[%c3_53] : memref<8xf32, #tpu.memory_space<smem>>
    %82 = vector.broadcast %81 : f32 to vector<1x1x64x64xf32>
    %83 = arith.addf %80, %82 : vector<1x1x64x64xf32>
    %cst_54 = arith.constant 0.000000e+00 : f32
    %84 = vector.broadcast %cst_54 : f32 to vector<1x1x64x64xf32>
    %85 = arith.maximumf %83, %84 : vector<1x1x64x64xf32>
    %c0_55 = arith.constant 0 : index
    %c3_56 = arith.constant 3 : index
    %c1_57 = arith.constant 1 : index
    %c1_58 = arith.constant 1 : index
    %86 = vector.load %arg3[%c0_55, %c3_56, %c1_57, %c1_58] : memref<1x8x66x66xf32, #tpu.memory_space<vmem>>, vector<1x1x64x64xf32>
    tpu.vector_store %arg3[%c0_55, %c3_56, %c1_57, %c1_58], %85 {strides = array<i32>} : memref<1x8x66x66xf32, #tpu.memory_space<vmem>>, vector<1x1x64x64xf32>,
    %c4_59 = arith.constant 4 : index
    %87 = memref.load %arg2[%c4_59] : memref<8xf32, #tpu.memory_space<smem>>
    %cst_60 = arith.constant 0.000000e+00 : f32
    %88 = arith.maximumf %87, %cst_60 : f32
    %89 = vector.broadcast %88 : f32 to vector<1x1x66x66xf32>
    %c0_61 = arith.constant 0 : index
    %c4_62 = arith.constant 4 : index
    %c0_63 = arith.constant 0 : index
    %c0_64 = arith.constant 0 : index
    %90 = vector.load %arg3[%c0_61, %c4_62, %c0_63, %c0_64] : memref<1x8x66x66xf32, #tpu.memory_space<vmem>>, vector<1x1x66x66xf32>
    tpu.vector_store %arg3[%c0_61, %c4_62, %c0_63, %c0_64], %89 {strides = array<i32>} : memref<1x8x66x66xf32, #tpu.memory_space<vmem>>, vector<1x1x66x66xf32>,
    %c12 = arith.constant 12 : index
    %91 = memref.load %arg1[%c12] : memref<24xf32, #tpu.memory_space<smem>>
    %92 = vector.broadcast %91 : f32 to vector<1x1x64x64xf32>
    %93 = arith.mulf %92, %0 : vector<1x1x64x64xf32>
    %c13 = arith.constant 13 : index
    %94 = memref.load %arg1[%c13] : memref<24xf32, #tpu.memory_space<smem>>
    %95 = vector.broadcast %94 : f32 to vector<1x1x64x64xf32>
    %96 = arith.mulf %95, %1 : vector<1x1x64x64xf32>
    %97 = arith.addf %93, %96 : vector<1x1x64x64xf32>
    %c14 = arith.constant 14 : index
    %98 = memref.load %arg1[%c14] : memref<24xf32, #tpu.memory_space<smem>>
    %99 = vector.broadcast %98 : f32 to vector<1x1x64x64xf32>
    %100 = arith.mulf %99, %2 : vector<1x1x64x64xf32>
    %101 = arith.addf %97, %100 : vector<1x1x64x64xf32>
    %c4_65 = arith.constant 4 : index
    %102 = memref.load %arg2[%c4_65] : memref<8xf32, #tpu.memory_space<smem>>
    %103 = vector.broadcast %102 : f32 to vector<1x1x64x64xf32>
    %104 = arith.addf %101, %103 : vector<1x1x64x64xf32>
    %cst_66 = arith.constant 0.000000e+00 : f32
    %105 = vector.broadcast %cst_66 : f32 to vector<1x1x64x64xf32>
    %106 = arith.maximumf %104, %105 : vector<1x1x64x64xf32>
    %c0_67 = arith.constant 0 : index
    %c4_68 = arith.constant 4 : index
    %c1_69 = arith.constant 1 : index
    %c1_70 = arith.constant 1 : index
    %107 = vector.load %arg3[%c0_67, %c4_68, %c1_69, %c1_70] : memref<1x8x66x66xf32, #tpu.memory_space<vmem>>, vector<1x1x64x64xf32>
    tpu.vector_store %arg3[%c0_67, %c4_68, %c1_69, %c1_70], %106 {strides = array<i32>} : memref<1x8x66x66xf32, #tpu.memory_space<vmem>>, vector<1x1x64x64xf32>,
    %c5_71 = arith.constant 5 : index
    %108 = memref.load %arg2[%c5_71] : memref<8xf32, #tpu.memory_space<smem>>
    %cst_72 = arith.constant 0.000000e+00 : f32
    %109 = arith.maximumf %108, %cst_72 : f32
    %110 = vector.broadcast %109 : f32 to vector<1x1x66x66xf32>
    %c0_73 = arith.constant 0 : index
    %c5_74 = arith.constant 5 : index
    %c0_75 = arith.constant 0 : index
    %c0_76 = arith.constant 0 : index
    %111 = vector.load %arg3[%c0_73, %c5_74, %c0_75, %c0_76] : memref<1x8x66x66xf32, #tpu.memory_space<vmem>>, vector<1x1x66x66xf32>
    tpu.vector_store %arg3[%c0_73, %c5_74, %c0_75, %c0_76], %110 {strides = array<i32>} : memref<1x8x66x66xf32, #tpu.memory_space<vmem>>, vector<1x1x66x66xf32>,
    %c15 = arith.constant 15 : index
    %112 = memref.load %arg1[%c15] : memref<24xf32, #tpu.memory_space<smem>>
    %113 = vector.broadcast %112 : f32 to vector<1x1x64x64xf32>
    %114 = arith.mulf %113, %0 : vector<1x1x64x64xf32>
    %c16 = arith.constant 16 : index
    %115 = memref.load %arg1[%c16] : memref<24xf32, #tpu.memory_space<smem>>
    %116 = vector.broadcast %115 : f32 to vector<1x1x64x64xf32>
    %117 = arith.mulf %116, %1 : vector<1x1x64x64xf32>
    %118 = arith.addf %114, %117 : vector<1x1x64x64xf32>
    %c17 = arith.constant 17 : index
    %119 = memref.load %arg1[%c17] : memref<24xf32, #tpu.memory_space<smem>>
    %120 = vector.broadcast %119 : f32 to vector<1x1x64x64xf32>
    %121 = arith.mulf %120, %2 : vector<1x1x64x64xf32>
    %122 = arith.addf %118, %121 : vector<1x1x64x64xf32>
    %c5_77 = arith.constant 5 : index
    %123 = memref.load %arg2[%c5_77] : memref<8xf32, #tpu.memory_space<smem>>
    %124 = vector.broadcast %123 : f32 to vector<1x1x64x64xf32>
    %125 = arith.addf %122, %124 : vector<1x1x64x64xf32>
    %cst_78 = arith.constant 0.000000e+00 : f32
    %126 = vector.broadcast %cst_78 : f32 to vector<1x1x64x64xf32>
    %127 = arith.maximumf %125, %126 : vector<1x1x64x64xf32>
    %c0_79 = arith.constant 0 : index
    %c5_80 = arith.constant 5 : index
    %c1_81 = arith.constant 1 : index
    %c1_82 = arith.constant 1 : index
    %128 = vector.load %arg3[%c0_79, %c5_80, %c1_81, %c1_82] : memref<1x8x66x66xf32, #tpu.memory_space<vmem>>, vector<1x1x64x64xf32>
    tpu.vector_store %arg3[%c0_79, %c5_80, %c1_81, %c1_82], %127 {strides = array<i32>} : memref<1x8x66x66xf32, #tpu.memory_space<vmem>>, vector<1x1x64x64xf32>,
    %c6_83 = arith.constant 6 : index
    %129 = memref.load %arg2[%c6_83] : memref<8xf32, #tpu.memory_space<smem>>
    %cst_84 = arith.constant 0.000000e+00 : f32
    %130 = arith.maximumf %129, %cst_84 : f32
    %131 = vector.broadcast %130 : f32 to vector<1x1x66x66xf32>
    %c0_85 = arith.constant 0 : index
    %c6_86 = arith.constant 6 : index
    %c0_87 = arith.constant 0 : index
    %c0_88 = arith.constant 0 : index
    %132 = vector.load %arg3[%c0_85, %c6_86, %c0_87, %c0_88] : memref<1x8x66x66xf32, #tpu.memory_space<vmem>>, vector<1x1x66x66xf32>
    tpu.vector_store %arg3[%c0_85, %c6_86, %c0_87, %c0_88], %131 {strides = array<i32>} : memref<1x8x66x66xf32, #tpu.memory_space<vmem>>, vector<1x1x66x66xf32>,
    %c18 = arith.constant 18 : index
    %133 = memref.load %arg1[%c18] : memref<24xf32, #tpu.memory_space<smem>>
    %134 = vector.broadcast %133 : f32 to vector<1x1x64x64xf32>
    %135 = arith.mulf %134, %0 : vector<1x1x64x64xf32>
    %c19 = arith.constant 19 : index
    %136 = memref.load %arg1[%c19] : memref<24xf32, #tpu.memory_space<smem>>
    %137 = vector.broadcast %136 : f32 to vector<1x1x64x64xf32>
    %138 = arith.mulf %137, %1 : vector<1x1x64x64xf32>
    %139 = arith.addf %135, %138 : vector<1x1x64x64xf32>
    %c20 = arith.constant 20 : index
    %140 = memref.load %arg1[%c20] : memref<24xf32, #tpu.memory_space<smem>>
    %141 = vector.broadcast %140 : f32 to vector<1x1x64x64xf32>
    %142 = arith.mulf %141, %2 : vector<1x1x64x64xf32>
    %143 = arith.addf %139, %142 : vector<1x1x64x64xf32>
    %c6_89 = arith.constant 6 : index
    %144 = memref.load %arg2[%c6_89] : memref<8xf32, #tpu.memory_space<smem>>
    %145 = vector.broadcast %144 : f32 to vector<1x1x64x64xf32>
    %146 = arith.addf %143, %145 : vector<1x1x64x64xf32>
    %cst_90 = arith.constant 0.000000e+00 : f32
    %147 = vector.broadcast %cst_90 : f32 to vector<1x1x64x64xf32>
    %148 = arith.maximumf %146, %147 : vector<1x1x64x64xf32>
    %c0_91 = arith.constant 0 : index
    %c6_92 = arith.constant 6 : index
    %c1_93 = arith.constant 1 : index
    %c1_94 = arith.constant 1 : index
    %149 = vector.load %arg3[%c0_91, %c6_92, %c1_93, %c1_94] : memref<1x8x66x66xf32, #tpu.memory_space<vmem>>, vector<1x1x64x64xf32>
    tpu.vector_store %arg3[%c0_91, %c6_92, %c1_93, %c1_94], %148 {strides = array<i32>} : memref<1x8x66x66xf32, #tpu.memory_space<vmem>>, vector<1x1x64x64xf32>,
    %c7_95 = arith.constant 7 : index
    %150 = memref.load %arg2[%c7_95] : memref<8xf32, #tpu.memory_space<smem>>
    %cst_96 = arith.constant 0.000000e+00 : f32
    %151 = arith.maximumf %150, %cst_96 : f32
    %152 = vector.broadcast %151 : f32 to vector<1x1x66x66xf32>
    %c0_97 = arith.constant 0 : index
    %c7_98 = arith.constant 7 : index
    %c0_99 = arith.constant 0 : index
    %c0_100 = arith.constant 0 : index
    %153 = vector.load %arg3[%c0_97, %c7_98, %c0_99, %c0_100] : memref<1x8x66x66xf32, #tpu.memory_space<vmem>>, vector<1x1x66x66xf32>
    tpu.vector_store %arg3[%c0_97, %c7_98, %c0_99, %c0_100], %152 {strides = array<i32>} : memref<1x8x66x66xf32, #tpu.memory_space<vmem>>, vector<1x1x66x66xf32>,
    %c21 = arith.constant 21 : index
    %154 = memref.load %arg1[%c21] : memref<24xf32, #tpu.memory_space<smem>>
    %155 = vector.broadcast %154 : f32 to vector<1x1x64x64xf32>
    %156 = arith.mulf %155, %0 : vector<1x1x64x64xf32>
    %c22 = arith.constant 22 : index
    %157 = memref.load %arg1[%c22] : memref<24xf32, #tpu.memory_space<smem>>
    %158 = vector.broadcast %157 : f32 to vector<1x1x64x64xf32>
    %159 = arith.mulf %158, %1 : vector<1x1x64x64xf32>
    %160 = arith.addf %156, %159 : vector<1x1x64x64xf32>
    %c23 = arith.constant 23 : index
    %161 = memref.load %arg1[%c23] : memref<24xf32, #tpu.memory_space<smem>>
    %162 = vector.broadcast %161 : f32 to vector<1x1x64x64xf32>
    %163 = arith.mulf %162, %2 : vector<1x1x64x64xf32>
    %164 = arith.addf %160, %163 : vector<1x1x64x64xf32>
    %c7_101 = arith.constant 7 : index
    %165 = memref.load %arg2[%c7_101] : memref<8xf32, #tpu.memory_space<smem>>
    %166 = vector.broadcast %165 : f32 to vector<1x1x64x64xf32>
    %167 = arith.addf %164, %166 : vector<1x1x64x64xf32>
    %cst_102 = arith.constant 0.000000e+00 : f32
    %168 = vector.broadcast %cst_102 : f32 to vector<1x1x64x64xf32>
    %169 = arith.maximumf %167, %168 : vector<1x1x64x64xf32>
    %c0_103 = arith.constant 0 : index
    %c7_104 = arith.constant 7 : index
    %c1_105 = arith.constant 1 : index
    %c1_106 = arith.constant 1 : index
    %170 = vector.load %arg3[%c0_103, %c7_104, %c1_105, %c1_106] : memref<1x8x66x66xf32, #tpu.memory_space<vmem>>, vector<1x1x64x64xf32>
    tpu.vector_store %arg3[%c0_103, %c7_104, %c1_105, %c1_106], %169 {strides = array<i32>} : memref<1x8x66x66xf32, #tpu.memory_space<vmem>>, vector<1x1x64x64xf32>,
    return
  }
}

</mosaic_0001>

<llo_original>
// kernel: tpu_custom_call.1
$region0: #{tpu_custom_call.1}
  #allocation0 [shape = 'u32[]', space=smem, size = 0x4, offset = 0x4, fixed_abs, tag = 'smem constant byte address 0x4 - core index']
  #allocation1 [shape = 'u32[144,128]{1,0:T(1,128)}', space=vmem, size = 0x12000, scoped, tag = 'internal scratch']
  %s0 = inlined_call_operand.hbm [shape: f32[1,3,64,64], index: 0, kind: input, shape index: {}]
  %s1 = inlined_call_operand.vmem [shape: f32[24], index: 1, kind: input, shape index: {}]
  %s2 = inlined_call_operand.vmem [shape: f32[8], index: 2, kind: input, shape index: {}]
  %s3 = inlined_call_operand.vmem [shape: f32[1,8,66,66], index: 3, kind: output, shape index: {}]
  %s4 = sld [smem:[#allocation0]]
  $region34: #{tpu_custom_call.1} parent=0
    _
  %s6 = ssub.s32 1, %s4
  %s7 = scalar_select 0, %s6, %s4
  $region1: #{tpu_custom_call.1} parent=0
    #allocation2 [shape = 'u8[98304]{0}', space=vmem, size = 0x18000, scoped, tag = 'input window, operand 0, single buffered']
    #allocation3 [shape = 's32[1]{0}', space=sflag, size = 0x4, scoped, tag = 'scoped memory for tpu_custom_call.1']
    #allocation4 [shape = 's32[1]{0}', space=sflag, size = 0x4, scoped, tag = 'scoped memory for tpu_custom_call.1']
    #allocation5 [shape = 'u8[512]{0}', space=smem, size = 0x200, scoped, tag = 'input window, operand 1, single buffered']
    #allocation6 [shape = 'u8[512]{0}', space=smem, size = 0x200, scoped, tag = 'input window, operand 2, single buffered']
    #allocation7 [shape = 's32[1]{0}', space=sflag, size = 0x4, scoped, tag = 'scoped memory for tpu_custom_call.1']
    %8 = vsyncpa [#allocation3], 0
    %9 = vsyncpa [#allocation4], 0
    %10 = vsyncpa [#allocation7], 0
    // Predicated region
    $region2: #{tpu_custom_call.1} parent=1 // pred_check
      _
    $region3: #{tpu_custom_call.1} parent=1 // pred_check_branch
      %12 = sbr.rel (0) target = $region5
    $region4: #{tpu_custom_call.1} parent=1 // pred_region
      %s14 = ssub.s32 3072, 3072
      %15 = vsyncadd [#allocation3], %s14
      %s16 = sshll.u32 [#allocation2], 4
      %s17 = int_to_ptr.vmem [resolvable:$true] %s16
      %22 = dma.hbm_to_vmem [thread:$0]  %s0, 3072, %s17, [#allocation3], 128, 128, 8
    $region5: #{tpu_custom_call.1} parent=1 // pred_fallthru
      _
    // Predicated region
    $region6: #{tpu_custom_call.1} parent=1 // pred_check
      _
    $region7: #{tpu_custom_call.1} parent=1 // pred_check_branch
      %24 = sbr.rel (0) target = $region9
    $region8: #{tpu_custom_call.1} parent=1 // pred_region
      %s26 = ssub.s32 16, 16
      %27 = vsyncadd [#allocation4], %s26
      %s29 = sshll.u32 %s1, 4
      %s30 = int_to_ptr.vmem [resolvable:$true] %s29
      %32 = dma.vmem_to_smem %s30, 16, [#allocation5], [#allocation4]
    $region9: #{tpu_custom_call.1} parent=1 // pred_fallthru
      _
    // Predicated region
    $region10: #{tpu_custom_call.1} parent=1 // pred_check
      _
    $region11: #{tpu_custom_call.1} parent=1 // pred_check_branch
      %34 = sbr.rel (0) target = $region13
    $region12: #{tpu_custom_call.1} parent=1 // pred_region
      %s36 = ssub.s32 16, 16
      %37 = vsyncadd [#allocation7], %s36
      %s39 = sshll.u32 %s2, 4
      %s40 = int_to_ptr.vmem [resolvable:$true] %s39
      %42 = dma.vmem_to_smem %s40, 16, [#allocation6], [#allocation7]
    $region13: #{tpu_custom_call.1} parent=1 // pred_fallthru
      _
    // Predicated region
    $region14: #{tpu_custom_call.1} parent=1 // pred_check
      _
    $region15: #{tpu_custom_call.1} parent=1 // pred_check_branch
      %44 = sbr.rel (0) target = $region17
    $region16: #{tpu_custom_call.1} parent=1 // pred_region
      %45 = dma.done [#allocation3], 3072
    $region17: #{tpu_custom_call.1} parent=1 // pred_fallthru
      _
    // Predicated region
    $region18: #{tpu_custom_call.1} parent=1 // pred_check
      _
    $region19: #{tpu_custom_call.1} parent=1 // pred_check_branch
      %47 = sbr.rel (0) target = $region21
    $region20: #{tpu_custom_call.1} parent=1 // pred_region
      %48 = dma.done [#allocation4], 16
    $region21: #{tpu_custom_call.1} parent=1 // pred_fallthru
      _
    // Predicated region
    $region22: #{tpu_custom_call.1} parent=1 // pred_check
      _
    $region23: #{tpu_custom_call.1} parent=1 // pred_check_branch
      %50 = sbr.rel (0) target = $region25
    $region24: #{tpu_custom_call.1} parent=1 // pred_region
      %51 = dma.done [#allocation7], 16
    $region25: #{tpu_custom_call.1} parent=1 // pred_fallthru
      _
    %52 = sfence
    %v53 = vld [vmem:[#allocation2] sm:$0xff]
    %v54 = vld [vmem:[#allocation2 + $0x8] sm:$0xff]
    %v55 = vld [vmem:[#allocation2 + $0x10] sm:$0xff]
    %v56 = vld [vmem:[#allocation2 + $0x18] sm:$0xff]
    %v57 = vld [vmem:[#allocation2 + $0x20] sm:$0xff]
    %v58 = vld [vmem:[#allocation2 + $0x28] sm:$0xff]
    %v59 = vld [vmem:[#allocation2 + $0x30] sm:$0xff]
    %v60 = vld [vmem:[#allocation2 + $0x38] sm:$0xff]
    %s61 = scalar_lea.vmem [#allocation2], 64
    %v62 = vld [vmem:[%s61] sm:$0xff]
    %v63 = vld [vmem:[%s61 + $0x8] sm:$0xff]
    %v64 = vld [vmem:[%s61 + $0x10] sm:$0xff]
    %v65 = vld [vmem:[%s61 + $0x18] sm:$0xff]
    %v66 = vld [vmem:[%s61 + $0x20] sm:$0xff]
    %v67 = vld [vmem:[%s61 + $0x28] sm:$0xff]
    %v68 = vld [vmem:[%s61 + $0x30] sm:$0xff]
    %v69 = vld [vmem:[%s61 + $0x38] sm:$0xff]
    %s70 = scalar_lea.vmem [#allocation2], 128
    %v71 = vld [vmem:[%s70] sm:$0xff]
    %v72 = vld [vmem:[%s70 + $0x8] sm:$0xff]
    %v73 = vld [vmem:[%s70 + $0x10] sm:$0xff]
    %v74 = vld [vmem:[%s70 + $0x18] sm:$0xff]
    %v75 = vld [vmem:[%s70 + $0x20] sm:$0xff]
    %v76 = vld [vmem:[%s70 + $0x28] sm:$0xff]
    %v77 = vld [vmem:[%s70 + $0x30] sm:$0xff]
    %v78 = vld [vmem:[%s70 + $0x38] sm:$0xff]
    %s79 = sld [smem:[#allocation6]]
    %s80 = smax.f32 %s79, 0.0
    %v81 = vstv %s80
    %vm82 = vcmask 539648
    %83 = vst.msk [vmem:[%s3] sm:$0xff] %vm82, %v81
    %84 = vst.msk [vmem:[%s3 + $0x8] sm:$0xff] %vm82, %v81
    %85 = vst.msk [vmem:[%s3 + $0x10] sm:$0xff] %vm82, %v81
    %86 = vst.msk [vmem:[%s3 + $0x18] sm:$0xff] %vm82, %v81
    %87 = vst.msk [vmem:[%s3 + $0x20] sm:$0xff] %vm82, %v81
    %88 = vst.msk [vmem:[%s3 + $0x28] sm:$0xff] %vm82, %v81
    %89 = vst.msk [vmem:[%s3 + $0x30] sm:$0xff] %vm82, %v81
    %90 = vst.msk [vmem:[%s3 + $0x38] sm:$0xff] %vm82, %v81
    %vm91 = vcmask 533504
    %92 = vst.msk [vmem:[%s3 + $0x40] sm:$0x3] %vm91, %v81
    %s93 = sld [smem:[#allocation5]]
    %v94 = vstv %s93
    %v95 = vmul.f32 %v94, %v53
    %v96 = vmul.f32 %v94, %v54
    %v97 = vmul.f32 %v94, %v55
    %v98 = vmul.f32 %v94, %v56
    %v99 = vmul.f32 %v94, %v57
    %v100 = vmul.f32 %v94, %v58
    %v101 = vmul.f32 %v94, %v59
    %v102 = vmul.f32 %v94, %v60
    %s103 = sld [smem:[#allocation5 + $0x1]]
    %v104 = vstv %s103
    %v105 = vmul.f32 %v104, %v62
    %v106 = vmul.f32 %v104, %v63
    %v107 = vmul.f32 %v104, %v64
    %v108 = vmul.f32 %v104, %v65
    %v109 = vmul.f32 %v104, %v66
    %v110 = vmul.f32 %v104, %v67
    %v111 = vmul.f32 %v104, %v68
    %v112 = vmul.f32 %v104, %v69
    %v113 = vadd.f32 %v95, %v105
    %v114 = vadd.f32 %v96, %v106
    %v115 = vadd.f32 %v97, %v107
    %v116 = vadd.f32 %v98, %v108
    %v117 = vadd.f32 %v99, %v109
    %v118 = vadd.f32 %v100, %v110
    %v119 = vadd.f32 %v101, %v111
    %v120 = vadd.f32 %v102, %v112
    %s121 = sld [smem:[#allocation5 + $0x2]]
    %v122 = vstv %s121
    %v123 = vmul.f32 %v122, %v71
    %v124 = vmul.f32 %v122, %v72
    %v125 = vmul.f32 %v122, %v73
    %v126 = vmul.f32 %v122, %v74
    %v127 = vmul.f32 %v122, %v75
    %v128 = vmul.f32 %v122, %v76
    %v129 = vmul.f32 %v122, %v77
    %v130 = vmul.f32 %v122, %v78
    %v131 = vadd.f32 %v113, %v123
    %v132 = vadd.f32 %v114, %v124
    %v133 = vadd.f32 %v115, %v125
    %v134 = vadd.f32 %v116, %v126
    %v135 = vadd.f32 %v117, %v127
    %v136 = vadd.f32 %v118, %v128
    %v137 = vadd.f32 %v119, %v129
    %v138 = vadd.f32 %v120, %v130
    %s139 = sld [smem:[#allocation6]]
    %v140 = vstv %s139
    %v141 = vadd.f32 %v131, %v140
    %v142 = vadd.f32 %v132, %v140
    %v143 = vadd.f32 %v133, %v140
    %v144 = vadd.f32 %v134, %v140
    %v145 = vadd.f32 %v135, %v140
    %v146 = vadd.f32 %v136, %v140
    %v147 = vadd.f32 %v137, %v140
    %v148 = vadd.f32 %v138, %v140
    %v149 = vmax.f32 %v141, 0.0
    %v150 = vmax.f32 %v142, 0.0
    %v151 = vmax.f32 %v143, 0.0
    %v152 = vmax.f32 %v144, 0.0
    %v153 = vmax.f32 %v145, 0.0
    %v154 = vmax.f32 %v146, 0.0
    %v155 = vmax.f32 %v147, 0.0
    %v156 = vmax.f32 %v148, 0.0
    %165 = vrot.lane.b32.xlu0 %v149, 1
    %v166 = vpop.permute.xlu0 %165
    %167 = vrot.lane.b32.xlu0 %v150, 1
    %v168 = vpop.permute.xlu0 %167
    %169 = vrot.lane.b32.xlu0 %v151, 1
    %v170 = vpop.permute.xlu0 %169
    %171 = vrot.lane.b32.xlu0 %v152, 1
    %v172 = vpop.permute.xlu0 %171
    %173 = vrot.lane.b32.xlu0 %v153, 1
    %v174 = vpop.permute.xlu0 %173
    %175 = vrot.lane.b32.xlu0 %v154, 1
    %v176 = vpop.permute.xlu0 %175
    %177 = vrot.lane.b32.xlu0 %v155, 1
    %v178 = vpop.permute.xlu0 %177
    %179 = vrot.lane.b32.xlu0 %v156, 1
    %v180 = vpop.permute.xlu0 %179
    %vm189 = vcmask 531464
    %190 = vst.msk [vmem:[%s3 + $0x1] sm:$0xff] %vm189, %v166
    %191 = vst.msk [vmem:[%s3 + $0x9] sm:$0xff] %vm189, %v168
    %192 = vst.msk [vmem:[%s3 + $0x11] sm:$0xff] %vm189, %v170
    %193 = vst.msk [vmem:[%s3 + $0x19] sm:$0xff] %vm189, %v172
    %194 = vst.msk [vmem:[%s3 + $0x21] sm:$0xff] %vm189, %v174
    %195 = vst.msk [vmem:[%s3 + $0x29] sm:$0xff] %vm189, %v176
    %196 = vst.msk [vmem:[%s3 + $0x31] sm:$0xff] %vm189, %v178
    %197 = vst.msk [vmem:[%s3 + $0x39] sm:$0xff] %vm189, %v180
    %s198 = sld [smem:[#allocation6 + $0x1]]
    %s199 = smax.f32 %s198, 0.0
    %v200 = vstv %s199
    %s201 = scalar_lea.vmem %s3, 72
    %202 = vst.msk [vmem:[%s201] sm:$0xff] %vm82, %v200
    %203 = vst.msk [vmem:[%s201 + $0x8] sm:$0xff] %vm82, %v200
    %204 = vst.msk [vmem:[%s201 + $0x10] sm:$0xff] %vm82, %v200
    %205 = vst.msk [vmem:[%s201 + $0x18] sm:$0xff] %vm82, %v200
    %206 = vst.msk [vmem:[%s201 + $0x20] sm:$0xff] %vm82, %v200
    %207 = vst.msk [vmem:[%s201 + $0x28] sm:$0xff] %vm82, %v200
    %208 = vst.msk [vmem:[%s201 + $0x30] sm:$0xff] %vm82, %v200
    %209 = vst.msk [vmem:[%s201 + $0x38] sm:$0xff] %vm82, %v200
    %210 = vst.msk [vmem:[%s201 + $0x40] sm:$0x3] %vm91, %v200
    %s211 = sld [smem:[#allocation5 + $0x3]]
    %v212 = vstv %s211
    %v213 = vmul.f32 %v212, %v53
    %v214 = vmul.f32 %v212, %v54
    %v215 = vmul.f32 %v212, %v55
    %v216 = vmul.f32 %v212, %v56
    %v217 = vmul.f32 %v212, %v57
    %v218 = vmul.f32 %v212, %v58
    %v219 = vmul.f32 %v212, %v59
    %v220 = vmul.f32 %v212, %v60
    %s221 = sld [smem:[#allocation5 + $0x4]]
    %v222 = vstv %s221
    %v223 = vmul.f32 %v222, %v62
    %v224 = vmul.f32 %v222, %v63
    %v225 = vmul.f32 %v222, %v64
    %v226 = vmul.f32 %v222, %v65
    %v227 = vmul.f32 %v222, %v66
    %v228 = vmul.f32 %v222, %v67
    %v229 = vmul.f32 %v222, %v68
    %v230 = vmul.f32 %v222, %v69
    %v231 = vadd.f32 %v213, %v223
    %v232 = vadd.f32 %v214, %v224
    %v233 = vadd.f32 %v215, %v225
    %v234 = vadd.f32 %v216, %v226
    %v235 = vadd.f32 %v217, %v227
    %v236 = vadd.f32 %v218, %v228
    %v237 = vadd.f32 %v219, %v229
    %v238 = vadd.f32 %v220, %v230
    %s239 = sld [smem:[#allocation5 + $0x5]]
    %v240 = vstv %s239
    %v241 = vmul.f32 %v240, %v71
    %v242 = vmul.f32 %v240, %v72
    %v243 = vmul.f32 %v240, %v73
    %v244 = vmul.f32 %v240, %v74
    %v245 = vmul.f32 %v240, %v75
    %v246 = vmul.f32 %v240, %v76
    %v247 = vmul.f32 %v240, %v77
    %v248 = vmul.f32 %v240, %v78
    %v249 = vadd.f32 %v231, %v241
    %v250 = vadd.f32 %v232, %v242
    %v251 = vadd.f32 %v233, %v243
    %v252 = vadd.f32 %v234, %v244
    %v253 = vadd.f32 %v235, %v245
    %v254 = vadd.f32 %v236, %v246
    %v255 = vadd.f32 %v237, %v247
    %v256 = vadd.f32 %v238, %v248
    %s257 = sld [smem:[#allocation6 + $0x1]]
    %v258 = vstv %s257
    %v259 = vadd.f32 %v249, %v258
    %v260 = vadd.f32 %v250, %v258
    %v261 = vadd.f32 %v251, %v258
    %v262 = vadd.f32 %v252, %v258
    %v263 = vadd.f32 %v253, %v258
    %v264 = vadd.f32 %v254, %v258
    %v265 = vadd.f32 %v255, %v258
    %v266 = vadd.f32 %v256, %v258
    %v267 = vmax.f32 %v259, 0.0
    %v268 = vmax.f32 %v260, 0.0
    %v269 = vmax.f32 %v261, 0.0
    %v270 = vmax.f32 %v262, 0.0
    %v271 = vmax.f32 %v263, 0.0
    %v272 = vmax.f32 %v264, 0.0
    %v273 = vmax.f32 %v265, 0.0
    %v274 = vmax.f32 %v266, 0.0
    %283 = vrot.lane.b32.xlu0 %v267, 1
    %v284 = vpop.permute.xlu0 %283
    %285 = vrot.lane.b32.xlu0 %v268, 1
    %v286 = vpop.permute.xlu0 %285
    %287 = vrot.lane.b32.xlu0 %v269, 1
    %v288 = vpop.permute.xlu0 %287
    %289 = vrot.lane.b32.xlu0 %v270, 1
    %v290 = vpop.permute.xlu0 %289
    %291 = vrot.lane.b32.xlu0 %v271, 1
    %v292 = vpop.permute.xlu0 %291
    %293 = vrot.lane.b32.xlu0 %v272, 1
    %v294 = vpop.permute.xlu0 %293
    %295 = vrot.lane.b32.xlu0 %v273, 1
    %v296 = vpop.permute.xlu0 %295
    %297 = vrot.lane.b32.xlu0 %v274, 1
    %v298 = vpop.permute.xlu0 %297
    %307 = vst.msk [vmem:[%s201 + $0x1] sm:$0xff] %vm189, %v284
    %308 = vst.msk [vmem:[%s201 + $0x9] sm:$0xff] %vm189, %v286
    %309 = vst.msk [vmem:[%s201 + $0x11] sm:$0xff] %vm189, %v288
    %310 = vst.msk [vmem:[%s201 + $0x19] sm:$0xff] %vm189, %v290
    %311 = vst.msk [vmem:[%s201 + $0x21] sm:$0xff] %vm189, %v292
    %312 = vst.msk [vmem:[%s201 + $0x29] sm:$0xff] %vm189, %v294
    %313 = vst.msk [vmem:[%s201 + $0x31] sm:$0xff] %vm189, %v296
    %314 = vst.msk [vmem:[%s201 + $0x39] sm:$0xff] %vm189, %v298
    %s315 = sld [smem:[#allocation6 + $0x2]]
    %s316 = smax.f32 %s315, 0.0
    %v317 = vstv %s316
    %s318 = scalar_lea.vmem %s3, 144
    %319 = vst.msk [vmem:[%s318] sm:$0xff] %vm82, %v317
    %320 = vst.msk [vmem:[%s318 + $0x8] sm:$0xff] %vm82, %v317
    %321 = vst.msk [vmem:[%s318 + $0x10] sm:$0xff] %vm82, %v317
    %322 = vst.msk [vmem:[%s318 + $0x18] sm:$0xff] %vm82, %v317
    %323 = vst.msk [vmem:[%s318 + $0x20] sm:$0xff] %vm82, %v317
    %324 = vst.msk [vmem:[%s318 + $0x28] sm:$0xff] %vm82, %v317
    %325 = vst.msk [vmem:[%s318 + $0x30] sm:$0xff] %vm82, %v317
    %326 = vst.msk [vmem:[%s318 + $0x38] sm:$0xff] %vm82, %v317
    %327 = vst.msk [vmem:[%s318 + $0x40] sm:$0x3] %vm91, %v317
    %s328 = sld [smem:[#allocation5 + $0x6]]
    %v329 = vstv %s328
    %v330 = vmul.f32 %v329, %v53
    %v331 = vmul.f32 %v329, %v54
    %v332 = vmul.f32 %v329, %v55
    %v333 = vmul.f32 %v329, %v56
    %v334 = vmul.f32 %v329, %v57
    %v335 = vmul.f32 %v329, %v58
    %v336 = vmul.f32 %v329, %v59
    %v337 = vmul.f32 %v329, %v60
    %s338 = sld [smem:[#allocation5 + $0x7]]
    %v339 = vstv %s338
    %v340 = vmul.f32 %v339, %v62
    %v341 = vmul.f32 %v339, %v63
    %v342 = vmul.f32 %v339, %v64
    %v343 = vmul.f32 %v339, %v65
    %v344 = vmul.f32 %v339, %v66
    %v345 = vmul.f32 %v339, %v67
    %v346 = vmul.f32 %v339, %v68
    %v347 = vmul.f32 %v339, %v69
    %v348 = vadd.f32 %v330, %v340
    %v349 = vadd.f32 %v331, %v341
    %v350 = vadd.f32 %v332, %v342
    %v351 = vadd.f32 %v333, %v343
    %v352 = vadd.f32 %v334, %v344
    %v353 = vadd.f32 %v335, %v345
    %v354 = vadd.f32 %v336, %v346
    %v355 = vadd.f32 %v337, %v347
    %s356 = sld [smem:[#allocation5 + $0x8]]
    %v357 = vstv %s356
    %v358 = vmul.f32 %v357, %v71
    %v359 = vmul.f32 %v357, %v72
    %v360 = vmul.f32 %v357, %v73
    %v361 = vmul.f32 %v357, %v74
    %v362 = vmul.f32 %v357, %v75
    %v363 = vmul.f32 %v357, %v76
    %v364 = vmul.f32 %v357, %v77
    %v365 = vmul.f32 %v357, %v78
    %v366 = vadd.f32 %v348, %v358
    %v367 = vadd.f32 %v349, %v359
    %v368 = vadd.f32 %v350, %v360
    %v369 = vadd.f32 %v351, %v361
    %v370 = vadd.f32 %v352, %v362
    %v371 = vadd.f32 %v353, %v363
    %v372 = vadd.f32 %v354, %v364
    %v373 = vadd.f32 %v355, %v365
    %s374 = sld [smem:[#allocation6 + $0x2]]
    %v375 = vstv %s374
    %v376 = vadd.f32 %v366, %v375
    %v377 = vadd.f32 %v367, %v375
    %v378 = vadd.f32 %v368, %v375
    %v379 = vadd.f32 %v369, %v375
    %v380 = vadd.f32 %v370, %v375
    %v381 = vadd.f32 %v371, %v375
    %v382 = vadd.f32 %v372, %v375
    %v383 = vadd.f32 %v373, %v375
    %v384 = vmax.f32 %v376, 0.0
    %v385 = vmax.f32 %v377, 0.0
    %v386 = vmax.f32 %v378, 0.0
    %v387 = vmax.f32 %v379, 0.0
    %v388 = vmax.f32 %v380, 0.0
    %v389 = vmax.f32 %v381, 0.0
    %v390 = vmax.f32 %v382, 0.0
    %v391 = vmax.f32 %v383, 0.0
    %400 = vrot.lane.b32.xlu0 %v384, 1
    %v401 = vpop.permute.xlu0 %400
    %402 = vrot.lane.b32.xlu0 %v385, 1
    %v403 = vpop.permute.xlu0 %402
    %404 = vrot.lane.b32.xlu0 %v386, 1
    %v405 = vpop.permute.xlu0 %404
    %406 = vrot.lane.b32.xlu0 %v387, 1
    %v407 = vpop.permute.xlu0 %406
    %408 = vrot.lane.b32.xlu0 %v388, 1
    %v409 = vpop.permute.xlu0 %408
    %410 = vrot.lane.b32.xlu0 %v389, 1
    %v411 = vpop.permute.xlu0 %410
    %412 = vrot.lane.b32.xlu0 %v390, 1
    %v413 = vpop.permute.xlu0 %412
    %414 = vrot.lane.b32.xlu0 %v391, 1
    %v415 = vpop.permute.xlu0 %414
    %424 = vst.msk [vmem:[%s318 + $0x1] sm:$0xff] %vm189, %v401
    %425 = vst.msk [vmem:[%s318 + $0x9] sm:$0xff] %vm189, %v403
    %426 = vst.msk [vmem:[%s318 + $0x11] sm:$0xff] %vm189, %v405
    %427 = vst.msk [vmem:[%s318 + $0x19] sm:$0xff] %vm189, %v407
    %428 = vst.msk [vmem:[%s318 + $0x21] sm:$0xff] %vm189, %v409
    %429 = vst.msk [vmem:[%s318 + $0x29] sm:$0xff] %vm189, %v411
    %430 = vst.msk [vmem:[%s318 + $0x31] sm:$0xff] %vm189, %v413
    %431 = vst.msk [vmem:[%s318 + $0x39] sm:$0xff] %vm189, %v415
    %s432 = sld [smem:[#allocation6 + $0x3]]
    %s433 = smax.f32 %s432, 0.0
    %v434 = vstv %s433
    %s435 = scalar_lea.vmem %s3, 216
    %436 = vst.msk [vmem:[%s435] sm:$0xff] %vm82, %v434
    %437 = vst.msk [vmem:[%s435 + $0x8] sm:$0xff] %vm82, %v434
    %438 = vst.msk [vmem:[%s435 + $0x10] sm:$0xff] %vm82, %v434
    %439 = vst.msk [vmem:[%s435 + $0x18] sm:$0xff] %vm82, %v434
    %440 = vst.msk [vmem:[%s435 + $0x20] sm:$0xff] %vm82, %v434
    %441 = vst.msk [vmem:[%s435 + $0x28] sm:$0xff] %vm82, %v434
    %442 = vst.msk [vmem:[%s435 + $0x30] sm:$0xff] %vm82, %v434
    %443 = vst.msk [vmem:[%s435 + $0x38] sm:$0xff] %vm82, %v434
    %444 = vst.msk [vmem:[%s435 + $0x40] sm:$0x3] %vm91, %v434
    %s445 = sld [smem:[#allocation5 + $0x9]]
    %v446 = vstv %s445
    %v447 = vmul.f32 %v446, %v53
    %v448 = vmul.f32 %v446, %v54
    %v449 = vmul.f32 %v446, %v55
    %v450 = vmul.f32 %v446, %v56
    %v451 = vmul.f32 %v446, %v57
    %v452 = vmul.f32 %v446, %v58
    %v453 = vmul.f32 %v446, %v59
    %v454 = vmul.f32 %v446, %v60
    %s455 = sld [smem:[#allocation5 + $0xa]]
    %v456 = vstv %s455
    %v457 = vmul.f32 %v456, %v62
    %v458 = vmul.f32 %v456, %v63
    %v459 = vmul.f32 %v456, %v64
    %v460 = vmul.f32 %v456, %v65
    %v461 = vmul.f32 %v456, %v66
    %v462 = vmul.f32 %v456, %v67
    %v463 = vmul.f32 %v456, %v68
    %v464 = vmul.f32 %v456, %v69
    %v465 = vadd.f32 %v447, %v457
    %v466 = vadd.f32 %v448, %v458
    %v467 = vadd.f32 %v449, %v459
    %v468 = vadd.f32 %v450, %v460
    %v469 = vadd.f32 %v451, %v461
    %v470 = vadd.f32 %v452, %v462
    %v471 = vadd.f32 %v453, %v463
    %v472 = vadd.f32 %v454, %v464
    %s473 = sld [smem:[#allocation5 + $0xb]]
    %v474 = vstv %s473
    %v475 = vmul.f32 %v474, %v71
    %v476 = vmul.f32 %v474, %v72
    %v477 = vmul.f32 %v474, %v73
    %v478 = vmul.f32 %v474, %v74
    %v479 = vmul.f32 %v474, %v75
    %v480 = vmul.f32 %v474, %v76
    %v481 = vmul.f32 %v474, %v77
    %v482 = vmul.f32 %v474, %v78
    %v483 = vadd.f32 %v465, %v475
    %v484 = vadd.f32 %v466, %v476
    %v485 = vadd.f32 %v467, %v477
    %v486 = vadd.f32 %v468, %v478
    %v487 = vadd.f32 %v469, %v479
    %v488 = vadd.f32 %v470, %v480
    %v489 = vadd.f32 %v471, %v481
    %v490 = vadd.f32 %v472, %v482
    %s491 = sld [smem:[#allocation6 + $0x3]]
    %v492 = vstv %s491
    %v493 = vadd.f32 %v483, %v492
    %v494 = vadd.f32 %v484, %v492
    %v495 = vadd.f32 %v485, %v492
    %v496 = vadd.f32 %v486, %v492
    %v497 = vadd.f32 %v487, %v492
    %v498 = vadd.f32 %v488, %v492
    %v499 = vadd.f32 %v489, %v492
    %v500 = vadd.f32 %v490, %v492
    %v501 = vmax.f32 %v493, 0.0
    %v502 = vmax.f32 %v494, 0.0
    %v503 = vmax.f32 %v495, 0.0
    %v504 = vmax.f32 %v496, 0.0
    %v505 = vmax.f32 %v497, 0.0
    %v506 = vmax.f32 %v498, 0.0
    %v507 = vmax.f32 %v499, 0.0
    %v508 = vmax.f32 %v500, 0.0
    %517 = vrot.lane.b32.xlu0 %v501, 1
    %v518 = vpop.permute.xlu0 %517
    %519 = vrot.lane.b32.xlu0 %v502, 1
    %v520 = vpop.permute.xlu0 %519
    %521 = vrot.lane.b32.xlu0 %v503, 1
    %v522 = vpop.permute.xlu0 %521
    %523 = vrot.lane.b32.xlu0 %v504, 1
    %v524 = vpop.permute.xlu0 %523
    %525 = vrot.lane.b32.xlu0 %v505, 1
    %v526 = vpop.permute.xlu0 %525
    %527 = vrot.lane.b32.xlu0 %v506, 1
    %v528 = vpop.permute.xlu0 %527
    %529 = vrot.lane.b32.xlu0 %v507, 1
    %v530 = vpop.permute.xlu0 %529
    %531 = vrot.lane.b32.xlu0 %v508, 1
    %v532 = vpop.permute.xlu0 %531
    %541 = vst.msk [vmem:[%s435 + $0x1] sm:$0xff] %vm189, %v518
    %542 = vst.msk [vmem:[%s435 + $0x9] sm:$0xff] %vm189, %v520
    %543 = vst.msk [vmem:[%s435 + $0x11] sm:$0xff] %vm189, %v522
    %544 = vst.msk [vmem:[%s435 + $0x19] sm:$0xff] %vm189, %v524
    %545 = vst.msk [vmem:[%s435 + $0x21] sm:$0xff] %vm189, %v526
    %546 = vst.msk [vmem:[%s435 + $0x29] sm:$0xff] %vm189, %v528
    %547 = vst.msk [vmem:[%s435 + $0x31] sm:$0xff] %vm189, %v530
    %548 = vst.msk [vmem:[%s435 + $0x39] sm:$0xff] %vm189, %v532
    %s549 = sld [smem:[#allocation6 + $0x4]]
    %s550 = smax.f32 %s549, 0.0
    %v551 = vstv %s550
    %s552 = scalar_lea.vmem %s3, 288
    %553 = vst.msk [vmem:[%s552] sm:$0xff] %vm82, %v551
    %554 = vst.msk [vmem:[%s552 + $0x8] sm:$0xff] %vm82, %v551
    %555 = vst.msk [vmem:[%s552 + $0x10] sm:$0xff] %vm82, %v551
    %556 = vst.msk [vmem:[%s552 + $0x18] sm:$0xff] %vm82, %v551
    %557 = vst.msk [vmem:[%s552 + $0x20] sm:$0xff] %vm82, %v551
    %558 = vst.msk [vmem:[%s552 + $0x28] sm:$0xff] %vm82, %v551
    %559 = vst.msk [vmem:[%s552 + $0x30] sm:$0xff] %vm82, %v551
    %560 = vst.msk [vmem:[%s552 + $0x38] sm:$0xff] %vm82, %v551
    %561 = vst.msk [vmem:[%s552 + $0x40] sm:$0x3] %vm91, %v551
    %s562 = sld [smem:[#allocation5 + $0xc]]
    %v563 = vstv %s562
    %v564 = vmul.f32 %v563, %v53
    %v565 = vmul.f32 %v563, %v54
    %v566 = vmul.f32 %v563, %v55
    %v567 = vmul.f32 %v563, %v56
    %v568 = vmul.f32 %v563, %v57
    %v569 = vmul.f32 %v563, %v58
    %v570 = vmul.f32 %v563, %v59
    %v571 = vmul.f32 %v563, %v60
    %s572 = sld [smem:[#allocation5 + $0xd]]
    %v573 = vstv %s572
    %v574 = vmul.f32 %v573, %v62
    %v575 = vmul.f32 %v573, %v63
    %v576 = vmul.f32 %v573, %v64
    %v577 = vmul.f32 %v573, %v65
    %v578 = vmul.f32 %v573, %v66
    %v579 = vmul.f32 %v573, %v67
    %v580 = vmul.f32 %v573, %v68
    %v581 = vmul.f32 %v573, %v69
    %v582 = vadd.f32 %v564, %v574
    %v583 = vadd.f32 %v565, %v575
    %v584 = vadd.f32 %v566, %v576
    %v585 = vadd.f32 %v567, %v577
    %v586 = vadd.f32 %v568, %v578
    %v587 = vadd.f32 %v569, %v579
    %v588 = vadd.f32 %v570, %v580
    %v589 = vadd.f32 %v571, %v581
    %s590 = sld [smem:[#allocation5 + $0xe]]
    %v591 = vstv %s590
    %v592 = vmul.f32 %v591, %v71
    %v593 = vmul.f32 %v591, %v72
    %v594 = vmul.f32 %v591, %v73
    %v595 = vmul.f32 %v591, %v74
    %v596 = vmul.f32 %v591, %v75
    %v597 = vmul.f32 %v591, %v76
    %v598 = vmul.f32 %v591, %v77
    %v599 = vmul.f32 %v591, %v78
    %v600 = vadd.f32 %v582, %v592
    %v601 = vadd.f32 %v583, %v593
    %v602 = vadd.f32 %v584, %v594
    %v603 = vadd.f32 %v585, %v595
    %v604 = vadd.f32 %v586, %v596
    %v605 = vadd.f32 %v587, %v597
    %v606 = vadd.f32 %v588, %v598
    %v607 = vadd.f32 %v589, %v599
    %s608 = sld [smem:[#allocation6 + $0x4]]
    %v609 = vstv %s608
    %v610 = vadd.f32 %v600, %v609
    %v611 = vadd.f32 %v601, %v609
    %v612 = vadd.f32 %v602, %v609
    %v613 = vadd.f32 %v603, %v609
    %v614 = vadd.f32 %v604, %v609
    %v615 = vadd.f32 %v605, %v609
    %v616 = vadd.f32 %v606, %v609
    %v617 = vadd.f32 %v607, %v609
    %v618 = vmax.f32 %v610, 0.0
    %v619 = vmax.f32 %v611, 0.0
    %v620 = vmax.f32 %v612, 0.0
    %v621 = vmax.f32 %v613, 0.0
    %v622 = vmax.f32 %v614, 0.0
    %v623 = vmax.f32 %v615, 0.0
    %v624 = vmax.f32 %v616, 0.0
    %v625 = vmax.f32 %v617, 0.0
    %634 = vrot.lane.b32.xlu0 %v618, 1
    %v635 = vpop.permute.xlu0 %634
    %636 = vrot.lane.b32.xlu0 %v619, 1
    %v637 = vpop.permute.xlu0 %636
    %638 = vrot.lane.b32.xlu0 %v620, 1
    %v639 = vpop.permute.xlu0 %638
    %640 = vrot.lane.b32.xlu0 %v621, 1
    %v641 = vpop.permute.xlu0 %640
    %642 = vrot.lane.b32.xlu0 %v622, 1
    %v643 = vpop.permute.xlu0 %642
    %644 = vrot.lane.b32.xlu0 %v623, 1
    %v645 = vpop.permute.xlu0 %644
    %646 = vrot.lane.b32.xlu0 %v624, 1
    %v647 = vpop.permute.xlu0 %646
    %648 = vrot.lane.b32.xlu0 %v625, 1
    %v649 = vpop.permute.xlu0 %648
    %658 = vst.msk [vmem:[%s552 + $0x1] sm:$0xff] %vm189, %v635
    %659 = vst.msk [vmem:[%s552 + $0x9] sm:$0xff] %vm189, %v637
    %660 = vst.msk [vmem:[%s552 + $0x11] sm:$0xff] %vm189, %v639
    %661 = vst.msk [vmem:[%s552 + $0x19] sm:$0xff] %vm189, %v641
    %662 = vst.msk [vmem:[%s552 + $0x21] sm:$0xff] %vm189, %v643
    %663 = vst.msk [vmem:[%s552 + $0x29] sm:$0xff] %vm189, %v645
    %664 = vst.msk [vmem:[%s552 + $0x31] sm:$0xff] %vm189, %v647
    %665 = vst.msk [vmem:[%s552 + $0x39] sm:$0xff] %vm189, %v649
    %s666 = sld [smem:[#allocation6 + $0x5]]
    %s667 = smax.f32 %s666, 0.0
    %v668 = vstv %s667
    %s669 = scalar_lea.vmem %s3, 360
    %670 = vst.msk [vmem:[%s669] sm:$0xff] %vm82, %v668
    %671 = vst.msk [vmem:[%s669 + $0x8] sm:$0xff] %vm82, %v668
    %672 = vst.msk [vmem:[%s669 + $0x10] sm:$0xff] %vm82, %v668
    %673 = vst.msk [vmem:[%s669 + $0x18] sm:$0xff] %vm82, %v668
    %674 = vst.msk [vmem:[%s669 + $0x20] sm:$0xff] %vm82, %v668
    %675 = vst.msk [vmem:[%s669 + $0x28] sm:$0xff] %vm82, %v668
    %676 = vst.msk [vmem:[%s669 + $0x30] sm:$0xff] %vm82, %v668
    %677 = vst.msk [vmem:[%s669 + $0x38] sm:$0xff] %vm82, %v668
    %678 = vst.msk [vmem:[%s669 + $0x40] sm:$0x3] %vm91, %v668
    %s679 = sld [smem:[#allocation5 + $0xf]]
    %v680 = vstv %s679
    %v681 = vmul.f32 %v680, %v53
    %v682 = vmul.f32 %v680, %v54
    %v683 = vmul.f32 %v680, %v55
    %v684 = vmul.f32 %v680, %v56
    %v685 = vmul.f32 %v680, %v57
    %v686 = vmul.f32 %v680, %v58
    %v687 = vmul.f32 %v680, %v59
    %v688 = vmul.f32 %v680, %v60
    %s689 = sld [smem:[#allocation5 + $0x10]]
    %v690 = vstv %s689
    %v691 = vmul.f32 %v690, %v62
    %v692 = vmul.f32 %v690, %v63
    %v693 = vmul.f32 %v690, %v64
    %v694 = vmul.f32 %v690, %v65
    %v695 = vmul.f32 %v690, %v66
    %v696 = vmul.f32 %v690, %v67
    %v697 = vmul.f32 %v690, %v68
    %v698 = vmul.f32 %v690, %v69
    %v699 = vadd.f32 %v681, %v691
    %v700 = vadd.f32 %v682, %v692
    %v701 = vadd.f32 %v683, %v693
    %v702 = vadd.f32 %v684, %v694
    %v703 = vadd.f32 %v685, %v695
    %v704 = vadd.f32 %v686, %v696
    %v705 = vadd.f32 %v687, %v697
    %v706 = vadd.f32 %v688, %v698
    %s707 = sld [smem:[#allocation5 + $0x11]]
    %v708 = vstv %s707
    %v709 = vmul.f32 %v708, %v71
    %v710 = vmul.f32 %v708, %v72
    %v711 = vmul.f32 %v708, %v73
    %v712 = vmul.f32 %v708, %v74
    %v713 = vmul.f32 %v708, %v75
    %v714 = vmul.f32 %v708, %v76
    %v715 = vmul.f32 %v708, %v77
    %v716 = vmul.f32 %v708, %v78
    %v717 = vadd.f32 %v699, %v709
    %v718 = vadd.f32 %v700, %v710
    %v719 = vadd.f32 %v701, %v711
    %v720 = vadd.f32 %v702, %v712
    %v721 = vadd.f32 %v703, %v713
    %v722 = vadd.f32 %v704, %v714
    %v723 = vadd.f32 %v705, %v715
    %v724 = vadd.f32 %v706, %v716
    %s725 = sld [smem:[#allocation6 + $0x5]]
    %v726 = vstv %s725
    %v727 = vadd.f32 %v717, %v726
    %v728 = vadd.f32 %v718, %v726
    %v729 = vadd.f32 %v719, %v726
    %v730 = vadd.f32 %v720, %v726
    %v731 = vadd.f32 %v721, %v726
    %v732 = vadd.f32 %v722, %v726
    %v733 = vadd.f32 %v723, %v726
    %v734 = vadd.f32 %v724, %v726
    %v735 = vmax.f32 %v727, 0.0
    %v736 = vmax.f32 %v728, 0.0
    %v737 = vmax.f32 %v729, 0.0
    %v738 = vmax.f32 %v730, 0.0
    %v739 = vmax.f32 %v731, 0.0
    %v740 = vmax.f32 %v732, 0.0
    %v741 = vmax.f32 %v733, 0.0
    %v742 = vmax.f32 %v734, 0.0
    %751 = vrot.lane.b32.xlu0 %v735, 1
    %v752 = vpop.permute.xlu0 %751
    %753 = vrot.lane.b32.xlu0 %v736, 1
    %v754 = vpop.permute.xlu0 %753
    %755 = vrot.lane.b32.xlu0 %v737, 1
    %v756 = vpop.permute.xlu0 %755
    %757 = vrot.lane.b32.xlu0 %v738, 1
    %v758 = vpop.permute.xlu0 %757
    %759 = vrot.lane.b32.xlu0 %v739, 1
    %v760 = vpop.permute.xlu0 %759
    %761 = vrot.lane.b32.xlu0 %v740, 1
    %v762 = vpop.permute.xlu0 %761
    %763 = vrot.lane.b32.xlu0 %v741, 1
    %v764 = vpop.permute.xlu0 %763
    %765 = vrot.lane.b32.xlu0 %v742, 1
    %v766 = vpop.permute.xlu0 %765
    %775 = vst.msk [vmem:[%s669 + $0x1] sm:$0xff] %vm189, %v752
    %776 = vst.msk [vmem:[%s669 + $0x9] sm:$0xff] %vm189, %v754
    %777 = vst.msk [vmem:[%s669 + $0x11] sm:$0xff] %vm189, %v756
    %778 = vst.msk [vmem:[%s669 + $0x19] sm:$0xff] %vm189, %v758
    %779 = vst.msk [vmem:[%s669 + $0x21] sm:$0xff] %vm189, %v760
    %780 = vst.msk [vmem:[%s669 + $0x29] sm:$0xff] %vm189, %v762
    %781 = vst.msk [vmem:[%s669 + $0x31] sm:$0xff] %vm189, %v764
    %782 = vst.msk [vmem:[%s669 + $0x39] sm:$0xff] %vm189, %v766
    %s783 = sld [smem:[#allocation6 + $0x6]]
    %s784 = smax.f32 %s783, 0.0
    %v785 = vstv %s784
    %s786 = scalar_lea.vmem %s3, 432
    %787 = vst.msk [vmem:[%s786] sm:$0xff] %vm82, %v785
    %788 = vst.msk [vmem:[%s786 + $0x8] sm:$0xff] %vm82, %v785
    %789 = vst.msk [vmem:[%s786 + $0x10] sm:$0xff] %vm82, %v785
    %790 = vst.msk [vmem:[%s786 + $0x18] sm:$0xff] %vm82, %v785
    %791 = vst.msk [vmem:[%s786 + $0x20] sm:$0xff] %vm82, %v785
    %792 = vst.msk [vmem:[%s786 + $0x28] sm:$0xff] %vm82, %v785
    %793 = vst.msk [vmem:[%s786 + $0x30] sm:$0xff] %vm82, %v785
    %794 = vst.msk [vmem:[%s786 + $0x38] sm:$0xff] %vm82, %v785
    %795 = vst.msk [vmem:[%s786 + $0x40] sm:$0x3] %vm91, %v785
    %s796 = sld [smem:[#allocation5 + $0x12]]
    %v797 = vstv %s796
    %v798 = vmul.f32 %v797, %v53
    %v799 = vmul.f32 %v797, %v54
    %v800 = vmul.f32 %v797, %v55
    %v801 = vmul.f32 %v797, %v56
    %v802 = vmul.f32 %v797, %v57
    %v803 = vmul.f32 %v797, %v58
    %v804 = vmul.f32 %v797, %v59
    %v805 = vmul.f32 %v797, %v60
    %s806 = sld [smem:[#allocation5 + $0x13]]
    %v807 = vstv %s806
    %v808 = vmul.f32 %v807, %v62
    %v809 = vmul.f32 %v807, %v63
    %v810 = vmul.f32 %v807, %v64
    %v811 = vmul.f32 %v807, %v65
    %v812 = vmul.f32 %v807, %v66
    %v813 = vmul.f32 %v807, %v67
    %v814 = vmul.f32 %v807, %v68
    %v815 = vmul.f32 %v807, %v69
    %v816 = vadd.f32 %v798, %v808
    %v817 = vadd.f32 %v799, %v809
    %v818 = vadd.f32 %v800, %v810
    %v819 = vadd.f32 %v801, %v811
    %v820 = vadd.f32 %v802, %v812
    %v821 = vadd.f32 %v803, %v813
    %v822 = vadd.f32 %v804, %v814
    %v823 = vadd.f32 %v805, %v815
    %s824 = sld [smem:[#allocation5 + $0x14]]
    %v825 = vstv %s824
    %v826 = vmul.f32 %v825, %v71
    %v827 = vmul.f32 %v825, %v72
    %v828 = vmul.f32 %v825, %v73
    %v829 = vmul.f32 %v825, %v74
    %v830 = vmul.f32 %v825, %v75
    %v831 = vmul.f32 %v825, %v76
    %v832 = vmul.f32 %v825, %v77
    %v833 = vmul.f32 %v825, %v78
    %v834 = vadd.f32 %v816, %v826
    %v835 = vadd.f32 %v817, %v827
    %v836 = vadd.f32 %v818, %v828
    %v837 = vadd.f32 %v819, %v829
    %v838 = vadd.f32 %v820, %v830
    %v839 = vadd.f32 %v821, %v831
    %v840 = vadd.f32 %v822, %v832
    %v841 = vadd.f32 %v823, %v833
    %s842 = sld [smem:[#allocation6 + $0x6]]
    %v843 = vstv %s842
    %v844 = vadd.f32 %v834, %v843
    %v845 = vadd.f32 %v835, %v843
    %v846 = vadd.f32 %v836, %v843
    %v847 = vadd.f32 %v837, %v843
    %v848 = vadd.f32 %v838, %v843
    %v849 = vadd.f32 %v839, %v843
    %v850 = vadd.f32 %v840, %v843
    %v851 = vadd.f32 %v841, %v843
    %v852 = vmax.f32 %v844, 0.0
    %v853 = vmax.f32 %v845, 0.0
    %v854 = vmax.f32 %v846, 0.0
    %v855 = vmax.f32 %v847, 0.0
    %v856 = vmax.f32 %v848, 0.0
    %v857 = vmax.f32 %v849, 0.0
    %v858 = vmax.f32 %v850, 0.0
    %v859 = vmax.f32 %v851, 0.0
    %868 = vrot.lane.b32.xlu0 %v852, 1
    %v869 = vpop.permute.xlu0 %868
    %870 = vrot.lane.b32.xlu0 %v853, 1
    %v871 = vpop.permute.xlu0 %870
    %872 = vrot.lane.b32.xlu0 %v854, 1
    %v873 = vpop.permute.xlu0 %872
    %874 = vrot.lane.b32.xlu0 %v855, 1
    %v875 = vpop.permute.xlu0 %874
    %876 = vrot.lane.b32.xlu0 %v856, 1
    %v877 = vpop.permute.xlu0 %876
    %878 = vrot.lane.b32.xlu0 %v857, 1
    %v879 = vpop.permute.xlu0 %878
    %880 = vrot.lane.b32.xlu0 %v858, 1
    %v881 = vpop.permute.xlu0 %880
    %882 = vrot.lane.b32.xlu0 %v859, 1
    %v883 = vpop.permute.xlu0 %882
    %892 = vst.msk [vmem:[%s786 + $0x1] sm:$0xff] %vm189, %v869
    %893 = vst.msk [vmem:[%s786 + $0x9] sm:$0xff] %vm189, %v871
    %894 = vst.msk [vmem:[%s786 + $0x11] sm:$0xff] %vm189, %v873
    %895 = vst.msk [vmem:[%s786 + $0x19] sm:$0xff] %vm189, %v875
    %896 = vst.msk [vmem:[%s786 + $0x21] sm:$0xff] %vm189, %v877
    %897 = vst.msk [vmem:[%s786 + $0x29] sm:$0xff] %vm189, %v879
    %898 = vst.msk [vmem:[%s786 + $0x31] sm:$0xff] %vm189, %v881
    %899 = vst.msk [vmem:[%s786 + $0x39] sm:$0xff] %vm189, %v883
    %s900 = sld [smem:[#allocation6 + $0x7]]
    %s901 = smax.f32 %s900, 0.0
    %v902 = vstv %s901
    %s903 = scalar_lea.vmem %s3, 504
    %904 = vst.msk [vmem:[%s903] sm:$0xff] %vm82, %v902
    %905 = vst.msk [vmem:[%s903 + $0x8] sm:$0xff] %vm82, %v902
    %906 = vst.msk [vmem:[%s903 + $0x10] sm:$0xff] %vm82, %v902
    %907 = vst.msk [vmem:[%s903 + $0x18] sm:$0xff] %vm82, %v902
    %908 = vst.msk [vmem:[%s903 + $0x20] sm:$0xff] %vm82, %v902
    %909 = vst.msk [vmem:[%s903 + $0x28] sm:$0xff] %vm82, %v902
    %910 = vst.msk [vmem:[%s903 + $0x30] sm:$0xff] %vm82, %v902
    %911 = vst.msk [vmem:[%s903 + $0x38] sm:$0xff] %vm82, %v902
    %912 = vst.msk [vmem:[%s903 + $0x40] sm:$0x3] %vm91, %v902
    %s913 = sld [smem:[#allocation5 + $0x15]]
    %v914 = vstv %s913
    %v915 = vmul.f32 %v914, %v53
    %v916 = vmul.f32 %v914, %v54
    %v917 = vmul.f32 %v914, %v55
    %v918 = vmul.f32 %v914, %v56
    %v919 = vmul.f32 %v914, %v57
    %v920 = vmul.f32 %v914, %v58
    %v921 = vmul.f32 %v914, %v59
    %v922 = vmul.f32 %v914, %v60
    %s923 = sld [smem:[#allocation5 + $0x16]]
    %v924 = vstv %s923
    %v925 = vmul.f32 %v924, %v62
    %v926 = vmul.f32 %v924, %v63
    %v927 = vmul.f32 %v924, %v64
    %v928 = vmul.f32 %v924, %v65
    %v929 = vmul.f32 %v924, %v66
    %v930 = vmul.f32 %v924, %v67
    %v931 = vmul.f32 %v924, %v68
    %v932 = vmul.f32 %v924, %v69
    %v933 = vadd.f32 %v915, %v925
    %v934 = vadd.f32 %v916, %v926
    %v935 = vadd.f32 %v917, %v927
    %v936 = vadd.f32 %v918, %v928
    %v937 = vadd.f32 %v919, %v929
    %v938 = vadd.f32 %v920, %v930
    %v939 = vadd.f32 %v921, %v931
    %v940 = vadd.f32 %v922, %v932
    %s941 = sld [smem:[#allocation5 + $0x17]]
    %v942 = vstv %s941
    %v943 = vmul.f32 %v942, %v71
    %v944 = vmul.f32 %v942, %v72
    %v945 = vmul.f32 %v942, %v73
    %v946 = vmul.f32 %v942, %v74
    %v947 = vmul.f32 %v942, %v75
    %v948 = vmul.f32 %v942, %v76
    %v949 = vmul.f32 %v942, %v77
    %v950 = vmul.f32 %v942, %v78
    %v951 = vadd.f32 %v933, %v943
    %v952 = vadd.f32 %v934, %v944
    %v953 = vadd.f32 %v935, %v945
    %v954 = vadd.f32 %v936, %v946
    %v955 = vadd.f32 %v937, %v947
    %v956 = vadd.f32 %v938, %v948
    %v957 = vadd.f32 %v939, %v949
    %v958 = vadd.f32 %v940, %v950
    %s959 = sld [smem:[#allocation6 + $0x7]]
    %v960 = vstv %s959
    %v961 = vadd.f32 %v951, %v960
    %v962 = vadd.f32 %v952, %v960
    %v963 = vadd.f32 %v953, %v960
    %v964 = vadd.f32 %v954, %v960
    %v965 = vadd.f32 %v955, %v960
    %v966 = vadd.f32 %v956, %v960
    %v967 = vadd.f32 %v957, %v960
    %v968 = vadd.f32 %v958, %v960
    %v969 = vmax.f32 %v961, 0.0
    %v970 = vmax.f32 %v962, 0.0
    %v971 = vmax.f32 %v963, 0.0
    %v972 = vmax.f32 %v964, 0.0
    %v973 = vmax.f32 %v965, 0.0
    %v974 = vmax.f32 %v966, 0.0
    %v975 = vmax.f32 %v967, 0.0
    %v976 = vmax.f32 %v968, 0.0
    %985 = vrot.lane.b32.xlu0 %v969, 1
    %v986 = vpop.permute.xlu0 %985
    %987 = vrot.lane.b32.xlu0 %v970, 1
    %v988 = vpop.permute.xlu0 %987
    %989 = vrot.lane.b32.xlu0 %v971, 1
    %v990 = vpop.permute.xlu0 %989
    %991 = vrot.lane.b32.xlu0 %v972, 1
    %v992 = vpop.permute.xlu0 %991
    %993 = vrot.lane.b32.xlu0 %v973, 1
    %v994 = vpop.permute.xlu0 %993
    %995 = vrot.lane.b32.xlu0 %v974, 1
    %v996 = vpop.permute.xlu0 %995
    %997 = vrot.lane.b32.xlu0 %v975, 1
    %v998 = vpop.permute.xlu0 %997
    %999 = vrot.lane.b32.xlu0 %v976, 1
    %v1000 = vpop.permute.xlu0 %999
    %1009 = vst.msk [vmem:[%s903 + $0x1] sm:$0xff] %vm189, %v986
    %1010 = vst.msk [vmem:[%s903 + $0x9] sm:$0xff] %vm189, %v988
    %1011 = vst.msk [vmem:[%s903 + $0x11] sm:$0xff] %vm189, %v990
    %1012 = vst.msk [vmem:[%s903 + $0x19] sm:$0xff] %vm189, %v992
    %1013 = vst.msk [vmem:[%s903 + $0x21] sm:$0xff] %vm189, %v994
    %1014 = vst.msk [vmem:[%s903 + $0x29] sm:$0xff] %vm189, %v996
    %1015 = vst.msk [vmem:[%s903 + $0x31] sm:$0xff] %vm189, %v998
    %1016 = vst.msk [vmem:[%s903 + $0x39] sm:$0xff] %vm189, %v1000
    // Predicated region
    $region26: #{tpu_custom_call.1} parent=1 // pred_check
      _
    $region27: #{tpu_custom_call.1} parent=1 // pred_check_branch
      %1018 = sbr.rel (0) target = $region29
    $region28: #{tpu_custom_call.1} parent=1 // pred_region
      _
    $region29: #{tpu_custom_call.1} parent=1 // pred_fallthru
      _
    // Predicated region
    $region30: #{tpu_custom_call.1} parent=1 // pred_check
      _
    $region31: #{tpu_custom_call.1} parent=1 // pred_check_branch
      %1020 = sbr.rel (0) target = $region33
    $region32: #{tpu_custom_call.1} parent=1 // pred_region
      _
    $region33: #{tpu_custom_call.1} parent=1 // pred_fallthru
      _
    %1021 = vsyncpa [#allocation3], 1
    %1022 = vsyncpa [#allocation4], 1
    %1023 = vsyncpa [#allocation7], 1

</llo_original>
